<compile_context>
chip_gen: v7x
topology: tpu7x:2x2x1
jax: 0.10.0
libtpu: 0.0.40
codegen_flags: <defaults>
</compile_context>

<pallas_src>
import functools

import jax
import jax.numpy as jnp
from jax import lax
from jax.experimental import pallas as pl
from jax.experimental.pallas import tpu as pltpu

_LPAD = 128  # lane-aligned left/right zero padding of the flattened image scratch


def _basic_block_kernel(x_ref, w1_ref, s1_ref, b1_ref, w2_ref, s2_ref, b2_ref,
                        out_ref, xpad_ref, patch_ref, *, H, W):
    """Fused BasicBlock for one batch element, (C, H*W) layout (H*W on lanes)."""
    C = x_ref.shape[1]
    HW = H * W

    # Zero the padded flat-image scratch once; only the interior is rewritten
    # below, the zero borders feed the out-of-image taps of rows 0 and H-1.
    xpad_ref[...] = jnp.zeros_like(xpad_ref)

    # Column index of every flattened pixel (to mask taps that fall off a row).
    px = lax.broadcasted_iota(jnp.int32, (C, HW), 1) % W

    def conv3x3_bn(a, w_ref, s_ref, b_ref):
        # im2col into VMEM: patch[(ky*3+kx)*C + ci, p] = a[ci, p + dy*W + dx].
        xpad_ref[:, _LPAD:_LPAD + HW] = a            # lane-aligned interior store
        for ky in range(3):
            for kx in range(3):
                dy, dx = ky - 1, kx - 1
                d = dy * W + dx
                window = xpad_ref[:, _LPAD + d:_LPAD + d + HW]
                # Row boundary (dy) is handled by the zero padding; only the
                # column wrap between adjacent rows needs masking.
                if dx == -1:
                    window = jnp.where(px >= 1, window, 0.0)
                elif dx == 1:
                    window = jnp.where(px < W - 1, window, 0.0)
                t = ky * 3 + kx
                patch_ref[t * C:(t + 1) * C, :] = window
        # Single K=9*C MXU matmul; the (Cout, HW) result keeps HW on the lanes.
        acc = jnp.dot(w_ref[...], patch_ref[...],
                      preferred_element_type=jnp.float32)
        return acc * s_ref[...] + b_ref[...]         # folded eval-mode BatchNorm

    x = x_ref[0, :, :].astype(jnp.float32)                        # (C, HW)
    h = jnp.maximum(conv3x3_bn(x, w1_ref, s1_ref, b1_ref), 0.0)   # conv1+bn1+relu
    y = conv3x3_bn(h, w2_ref, s2_ref, b2_ref) + x                 # conv2+bn2+residual
    out_ref[0, :, :] = jnp.maximum(y, 0.0).astype(out_ref.dtype)  # final relu


def _conv_weight_to_matrix(w_oihw):
    """(Cout, Cin, 3, 3) OIHW -> (Cout, 9*Cin), K index = (ky*3+kx)*Cin + ci."""
    cout, cin = w_oihw.shape[0], w_oihw.shape[1]
    return jnp.transpose(w_oihw, (0, 2, 3, 1)).reshape(cout, 9 * cin)


def basic_block_forward(x_nchw, params):
    """BasicBlock forward (attention=False, downsample=None, stride=1)."""
    N, C, H, W = x_nchw.shape
    HW = H * W
    assert params["w1"].shape == (C, C, 3, 3), "inplanes must equal planes"

    x_flat = x_nchw.reshape(N, C, HW)
    w1m = _conv_weight_to_matrix(params["w1"]).astype(jnp.float32)
    w2m = _conv_weight_to_matrix(params["w2"]).astype(jnp.float32)
    s1 = params["s1"].reshape(C, 1).astype(jnp.float32)
    b1 = params["b1"].reshape(C, 1).astype(jnp.float32)
    s2 = params["s2"].reshape(C, 1).astype(jnp.float32)
    b2 = params["b2"].reshape(C, 1).astype(jnp.float32)

    kernel = functools.partial(_basic_block_kernel, H=H, W=W)

    xspec = pl.BlockSpec((1, C, HW), lambda n: (n, 0, 0))
    wspec = pl.BlockSpec((C, 9 * C), lambda n: (0, 0))
    vspec = pl.BlockSpec((C, 1), lambda n: (0, 0))

    flops = 2 * 2 * N * HW * (9 * C) * C              # two 3x3 convs as matmuls
    bytes_accessed = 4 * (2 * N * C * HW + 2 * 9 * C * C + 4 * C)
    cost = pl.CostEstimate(flops=flops, transcendentals=0,
                           bytes_accessed=bytes_accessed)

    out_flat = pl.pallas_call(
        kernel,
        out_shape=jax.ShapeDtypeStruct((N, C, HW), x_nchw.dtype),
        grid=(N,),
        in_specs=[xspec, wspec, vspec, vspec, wspec, vspec, vspec],
        out_specs=xspec,
        scratch_shapes=[
            pltpu.VMEM((C, HW + 2 * _LPAD), jnp.float32),   # zero-padded flat image
            pltpu.VMEM((9 * C, HW), jnp.float32),           # im2col patch matrix
        ],
        compiler_params=pltpu.CompilerParams(
            dimension_semantics=("parallel",)),
        cost_estimate=cost,
    )(x_flat, w1m, s1, b1, w2m, s2, b2)
    return out_flat.reshape(N, C, H, W)


def _fold_bn(gamma, beta, mean, var, eps=1e-5):
    scale = gamma / jnp.sqrt(var + eps)
    return scale, beta - mean * scale


def _reference(x_nchw, params):
    """Pure-JAX reference for correctness checking (NCHW, like the module)."""
    def conv(x, w):
        return lax.conv_general_dilated(
            x, w, window_strides=(1, 1), padding="SAME",
            dimension_numbers=("NCHW", "OIHW", "NCHW"))
    s1 = params["s1"].reshape(1, -1, 1, 1)
    b1 = params["b1"].reshape(1, -1, 1, 1)
    s2 = params["s2"].reshape(1, -1, 1, 1)
    b2 = params["b2"].reshape(1, -1, 1, 1)
    out = jnp.maximum(conv(x_nchw, params["w1"]) * s1 + b1, 0.0)
    out = conv(out, params["w2"]) * s2 + b2 + x_nchw
    return jnp.maximum(out, 0.0)


if __name__ == "__main__":
    # inplanes = planes = 8, 16x16 spatial, NCHW like the PyTorch module.
    N, C, H, W = 2, 8, 16, 16
    planes = C

    key = jax.random.PRNGKey(0)
    keys = jax.random.split(key, 11)

    x = jax.random.normal(keys[0], (N, C, H, W), jnp.float32)

    # conv3x3 weights in PyTorch OIHW convention, bias=False.
    w1 = 0.1 * jax.random.normal(keys[1], (planes, C, 3, 3), jnp.float32)
    w2 = 0.1 * jax.random.normal(keys[2], (planes, planes, 3, 3), jnp.float32)

    # BatchNorm parameters (eval-mode semantics), folded to scale/bias.
    g1 = 1.0 + 0.1 * jax.random.normal(keys[3], (planes,), jnp.float32)
    be1 = 0.1 * jax.random.normal(keys[4], (planes,), jnp.float32)
    m1 = 0.1 * jax.random.normal(keys[5], (planes,), jnp.float32)
    v1 = 1.0 + 0.1 * jax.random.uniform(keys[6], (planes,), jnp.float32)
    g2 = 1.0 + 0.1 * jax.random.normal(keys[7], (planes,), jnp.float32)
    be2 = 0.1 * jax.random.normal(keys[8], (planes,), jnp.float32)
    m2 = 0.1 * jax.random.normal(keys[9], (planes,), jnp.float32)
    v2 = 1.0 + 0.1 * jax.random.uniform(keys[10], (planes,), jnp.float32)

    s1, bb1 = _fold_bn(g1, be1, m1, v1)
    s2, bb2 = _fold_bn(g2, be2, m2, v2)

    params = {"w1": w1, "s1": s1, "b1": bb1, "w2": w2, "s2": s2, "b2": bb2}

    out = jax.block_until_ready(basic_block_forward(x, params))
    ref = jax.block_until_ready(_reference(x, params))

    assert out.shape == (N, C, H, W)
    err = jnp.max(jnp.abs(out - ref))
    assert jnp.allclose(out, ref, atol=1e-4, rtol=1e-4), f"max abs err {err}"

    print("KERNEL_OK")
</pallas_src>

<mosaic_0001>
module attributes {stable_mosaic.version = 11 : i64} {
  func.func @_basic_block_kernel(%arg0: i32, %arg1: memref<1x8x256xf32, #tpu.memory_space<vmem>>, %arg2: memref<8x72xf32, #tpu.memory_space<vmem>>, %arg3: memref<8x1xf32, #tpu.memory_space<vmem>>, %arg4: memref<8x1xf32, #tpu.memory_space<vmem>>, %arg5: memref<8x72xf32, #tpu.memory_space<vmem>>, %arg6: memref<8x1xf32, #tpu.memory_space<vmem>>, %arg7: memref<8x1xf32, #tpu.memory_space<vmem>>, %arg8: memref<1x8x256xf32, #tpu.memory_space<vmem>>, %arg9: memref<8x512xf32, #tpu.memory_space<vmem>>, %arg10: memref<72x256xf32, #tpu.memory_space<vmem>>) attributes {dimension_semantics = [#tpu.dimension_semantics<parallel>], iteration_bounds = array<i64: 2>, scalar_prefetch = 0 : i64, scratch_operands = 2 : i64, tpu.core_type = #tpu.core_type<tc>, window_params = [{transform_indices = @transform_0, window_bounds = array<i64: 1, 8, 256>}, {pipeline_mode = #tpu.pipeline_mode<synchronous>, transform_indices = @transform_1, window_bounds = array<i64: 8, 72>}, {pipeline_mode = #tpu.pipeline_mode<synchronous>, transform_indices = @transform_2, window_bounds = array<i64: 8, 1>}, {pipeline_mode = #tpu.pipeline_mode<synchronous>, transform_indices = @transform_3, window_bounds = array<i64: 8, 1>}, {pipeline_mode = #tpu.pipeline_mode<synchronous>, transform_indices = @transform_4, window_bounds = array<i64: 8, 72>}, {pipeline_mode = #tpu.pipeline_mode<synchronous>, transform_indices = @transform_5, window_bounds = array<i64: 8, 1>}, {pipeline_mode = #tpu.pipeline_mode<synchronous>, transform_indices = @transform_6, window_bounds = array<i64: 8, 1>}, {transform_indices = @transform_7, window_bounds = array<i64: 1, 8, 256>}]} {
    %cst = arith.constant 0.000000e+00 : f32
    %0 = vector.broadcast %cst : f32 to vector<8x512xf32>
    %c0 = arith.constant 0 : index
    %c0_0 = arith.constant 0 : index
    %1 = vector.load %arg9[%c0, %c0_0] : memref<8x512xf32, #tpu.memory_space<vmem>>, vector<8x512xf32>
    tpu.vector_store %arg9[%c0, %c0_0], %0 {strides = array<i32>} : memref<8x512xf32, #tpu.memory_space<vmem>>, vector<8x512xf32>,
    %2 = tpu.iota {dimensions = array<i32: 1>} : vector<8x256xi32>
    %c16_i32 = arith.constant 16 : i32
    %c0_i32 = arith.constant 0 : i32
    %3 = arith.cmpi eq, %c16_i32, %c0_i32 : i32
    %c1_i32 = arith.constant 1 : i32
    %4 = arith.select %3, %c1_i32, %c16_i32 : i32
    %5 = vector.broadcast %4 : i32 to vector<8x256xi32>
    %6 = arith.remsi %2, %5 : vector<8x256xi32>
    %c0_i32_1 = arith.constant 0 : i32
    %7 = vector.broadcast %c0_i32_1 : i32 to vector<8x256xi32>
    %8 = arith.cmpi ne, %6, %7 : vector<8x256xi32>
    %c0_i32_2 = arith.constant 0 : i32
    %9 = vector.broadcast %c0_i32_2 : i32 to vector<8x256xi32>
    %10 = arith.cmpi slt, %6, %9 : vector<8x256xi32>
    %c0_i32_3 = arith.constant 0 : i32
    %11 = arith.cmpi slt, %4, %c0_i32_3 : i32
    %12 = vector.broadcast %11 : i1 to vector<8x256xi1>
    %13 = vector.broadcast %12 : vector<8x256xi1> to vector<8x256xi1>
    %14 = arith.xori %10, %13 : vector<8x256xi1>
    %15 = arith.andi %14, %8 : vector<8x256xi1>
    %16 = vector.broadcast %4 : i32 to vector<8x256xi32>
    %17 = arith.addi %6, %16 : vector<8x256xi32>
    %18 = arith.select %15, %17, %6 : vector<8x256xi1>, vector<8x256xi32>
    %c0_4 = arith.constant 0 : index
    %c0_5 = arith.constant 0 : index
    %c0_6 = arith.constant 0 : index
    %19 = vector.load %arg1[%c0_4, %c0_5, %c0_6] : memref<1x8x256xf32, #tpu.memory_space<vmem>>, vector<1x8x256xf32>
    %20 = vector.shape_cast %19 : vector<1x8x256xf32> to vector<8x256xf32>
    %c0_7 = arith.constant 0 : index
    %c128 = arith.constant 128 : index
    %21 = vector.load %arg9[%c0_7, %c128] : memref<8x512xf32, #tpu.memory_space<vmem>>, vector<8x256xf32>
    tpu.vector_store %arg9[%c0_7, %c128], %20 {strides = array<i32>} : memref<8x512xf32, #tpu.memory_space<vmem>>, vector<8x256xf32>,
    %c0_8 = arith.constant 0 : index
    %c111 = arith.constant 111 : index
    %22 = vector.load %arg9[%c0_8, %c111] : memref<8x512xf32, #tpu.memory_space<vmem>>, vector<8x256xf32>
    %c1_i32_9 = arith.constant 1 : i32
    %23 = vector.broadcast %c1_i32_9 : i32 to vector<8x256xi32>
    %24 = arith.cmpi sge, %18, %23 : vector<8x256xi32>
    %cst_10 = arith.constant 0.000000e+00 : f32
    %25 = vector.broadcast %cst_10 : f32 to vector<8x256xf32>
    %26 = arith.select %24, %22, %25 : vector<8x256xi1>, vector<8x256xf32>
    %c0_11 = arith.constant 0 : index
    %c0_12 = arith.constant 0 : index
    %27 = vector.load %arg10[%c0_11, %c0_12] : memref<72x256xf32, #tpu.memory_space<vmem>>, vector<8x256xf32>
    tpu.vector_store %arg10[%c0_11, %c0_12], %26 {strides = array<i32>} : memref<72x256xf32, #tpu.memory_space<vmem>>, vector<8x256xf32>,
    %c0_13 = arith.constant 0 : index
    %c112 = arith.constant 112 : index
    %28 = vector.load %arg9[%c0_13, %c112] : memref<8x512xf32, #tpu.memory_space<vmem>>, vector<8x256xf32>
    %c8 = arith.constant 8 : index
    %c0_14 = arith.constant 0 : index
    %29 = vector.load %arg10[%c8, %c0_14] : memref<72x256xf32, #tpu.memory_space<vmem>>, vector<8x256xf32>
    tpu.vector_store %arg10[%c8, %c0_14], %28 {strides = array<i32>} : memref<72x256xf32, #tpu.memory_space<vmem>>, vector<8x256xf32>,
    %c0_15 = arith.constant 0 : index
    %c113 = arith.constant 113 : index
    %30 = vector.load %arg9[%c0_15, %c113] : memref<8x512xf32, #tpu.memory_space<vmem>>, vector<8x256xf32>
    %c15_i32 = arith.constant 15 : i32
    %31 = vector.broadcast %c15_i32 : i32 to vector<8x256xi32>
    %32 = arith.cmpi slt, %18, %31 : vector<8x256xi32>
    %cst_16 = arith.constant 0.000000e+00 : f32
    %33 = vector.broadcast %cst_16 : f32 to vector<8x256xf32>
    %34 = arith.select %32, %30, %33 : vector<8x256xi1>, vector<8x256xf32>
    %c16 = arith.constant 16 : index
    %c0_17 = arith.constant 0 : index
    %35 = vector.load %arg10[%c16, %c0_17] : memref<72x256xf32, #tpu.memory_space<vmem>>, vector<8x256xf32>
    tpu.vector_store %arg10[%c16, %c0_17], %34 {strides = array<i32>} : memref<72x256xf32, #tpu.memory_space<vmem>>, vector<8x256xf32>,
    %c0_18 = arith.constant 0 : index
    %c127 = arith.constant 127 : index
    %36 = vector.load %arg9[%c0_18, %c127] : memref<8x512xf32, #tpu.memory_space<vmem>>, vector<8x256xf32>
    %c1_i32_19 = arith.constant 1 : i32
    %37 = vector.broadcast %c1_i32_19 : i32 to vector<8x256xi32>
    %38 = arith.cmpi sge, %18, %37 : vector<8x256xi32>
    %cst_20 = arith.constant 0.000000e+00 : f32
    %39 = vector.broadcast %cst_20 : f32 to vector<8x256xf32>
    %40 = arith.select %38, %36, %39 : vector<8x256xi1>, vector<8x256xf32>
    %c24 = arith.constant 24 : index
    %c0_21 = arith.constant 0 : index
    %41 = vector.load %arg10[%c24, %c0_21] : memref<72x256xf32, #tpu.memory_space<vmem>>, vector<8x256xf32>
    tpu.vector_store %arg10[%c24, %c0_21], %40 {strides = array<i32>} : memref<72x256xf32, #tpu.memory_space<vmem>>, vector<8x256xf32>,
    %c0_22 = arith.constant 0 : index
    %c128_23 = arith.constant 128 : index
    %42 = vector.load %arg9[%c0_22, %c128_23] : memref<8x512xf32, #tpu.memory_space<vmem>>, vector<8x256xf32>
    %c32 = arith.constant 32 : index
    %c0_24 = arith.constant 0 : index
    %43 = vector.load %arg10[%c32, %c0_24] : memref<72x256xf32, #tpu.memory_space<vmem>>, vector<8x256xf32>
    tpu.vector_store %arg10[%c32, %c0_24], %42 {strides = array<i32>} : memref<72x256xf32, #tpu.memory_space<vmem>>, vector<8x256xf32>,
    %c0_25 = arith.constant 0 : index
    %c129 = arith.constant 129 : index
    %44 = vector.load %arg9[%c0_25, %c129] : memref<8x512xf32, #tpu.memory_space<vmem>>, vector<8x256xf32>
    %c15_i32_26 = arith.constant 15 : i32
    %45 = vector.broadcast %c15_i32_26 : i32 to vector<8x256xi32>
    %46 = arith.cmpi slt, %18, %45 : vector<8x256xi32>
    %cst_27 = arith.constant 0.000000e+00 : f32
    %47 = vector.broadcast %cst_27 : f32 to vector<8x256xf32>
    %48 = arith.select %46, %44, %47 : vector<8x256xi1>, vector<8x256xf32>
    %c40 = arith.constant 40 : index
    %c0_28 = arith.constant 0 : index
    %49 = vector.load %arg10[%c40, %c0_28] : memref<72x256xf32, #tpu.memory_space<vmem>>, vector<8x256xf32>
    tpu.vector_store %arg10[%c40, %c0_28], %48 {strides = array<i32>} : memref<72x256xf32, #tpu.memory_space<vmem>>, vector<8x256xf32>,
    %c0_29 = arith.constant 0 : index
    %c143 = arith.constant 143 : index
    %50 = vector.load %arg9[%c0_29, %c143] : memref<8x512xf32, #tpu.memory_space<vmem>>, vector<8x256xf32>
    %c1_i32_30 = arith.constant 1 : i32
    %51 = vector.broadcast %c1_i32_30 : i32 to vector<8x256xi32>
    %52 = arith.cmpi sge, %18, %51 : vector<8x256xi32>
    %cst_31 = arith.constant 0.000000e+00 : f32
    %53 = vector.broadcast %cst_31 : f32 to vector<8x256xf32>
    %54 = arith.select %52, %50, %53 : vector<8x256xi1>, vector<8x256xf32>
    %c48 = arith.constant 48 : index
    %c0_32 = arith.constant 0 : index
    %55 = vector.load %arg10[%c48, %c0_32] : memref<72x256xf32, #tpu.memory_space<vmem>>, vector<8x256xf32>
    tpu.vector_store %arg10[%c48, %c0_32], %54 {strides = array<i32>} : memref<72x256xf32, #tpu.memory_space<vmem>>, vector<8x256xf32>,
    %c0_33 = arith.constant 0 : index
    %c144 = arith.constant 144 : index
    %56 = vector.load %arg9[%c0_33, %c144] : memref<8x512xf32, #tpu.memory_space<vmem>>, vector<8x256xf32>
    %c56 = arith.constant 56 : index
    %c0_34 = arith.constant 0 : index
    %57 = vector.load %arg10[%c56, %c0_34] : memref<72x256xf32, #tpu.memory_space<vmem>>, vector<8x256xf32>
    tpu.vector_store %arg10[%c56, %c0_34], %56 {strides = array<i32>} : memref<72x256xf32, #tpu.memory_space<vmem>>, vector<8x256xf32>,
    %c0_35 = arith.constant 0 : index
    %c145 = arith.constant 145 : index
    %58 = vector.load %arg9[%c0_35, %c145] : memref<8x512xf32, #tpu.memory_space<vmem>>, vector<8x256xf32>
    %c15_i32_36 = arith.constant 15 : i32
    %59 = vector.broadcast %c15_i32_36 : i32 to vector<8x256xi32>
    %60 = arith.cmpi slt, %18, %59 : vector<8x256xi32>
    %cst_37 = arith.constant 0.000000e+00 : f32
    %61 = vector.broadcast %cst_37 : f32 to vector<8x256xf32>
    %62 = arith.select %60, %58, %61 : vector<8x256xi1>, vector<8x256xf32>
    %c64 = arith.constant 64 : index
    %c0_38 = arith.constant 0 : index
    %63 = vector.load %arg10[%c64, %c0_38] : memref<72x256xf32, #tpu.memory_space<vmem>>, vector<8x256xf32>
    tpu.vector_store %arg10[%c64, %c0_38], %62 {strides = array<i32>} : memref<72x256xf32, #tpu.memory_space<vmem>>, vector<8x256xf32>,
    %c0_39 = arith.constant 0 : index
    %c0_40 = arith.constant 0 : index
    %64 = vector.load %arg2[%c0_39, %c0_40] : memref<8x72xf32, #tpu.memory_space<vmem>>, vector<8x72xf32>
    %c0_41 = arith.constant 0 : index
    %c0_42 = arith.constant 0 : index
    %65 = vector.load %arg10[%c0_41, %c0_42] : memref<72x256xf32, #tpu.memory_space<vmem>>, vector<72x256xf32>
    %cst_43 = arith.constant dense<0.000000e+00> : vector<8x256xf32>
    %66 = tpu.matmul %64, %65, %cst_43 {dimension_numbers = #tpu.dot_dimension_numbers<[1], [0], [0], [1], [0, 0, 1, 1], [], []>} : vector<8x72xf32>, vector<72x256xf32>, vector<8x256xf32> -> vector<8x256xf32>
    %c0_44 = arith.constant 0 : index
    %c0_45 = arith.constant 0 : index
    %67 = vector.load %arg3[%c0_44, %c0_45] : memref<8x1xf32, #tpu.memory_space<vmem>>, vector<8x1xf32>
    %68 = vector.broadcast %67 : vector<8x1xf32> to vector<8x256xf32>
    %69 = arith.mulf %66, %68 : vector<8x256xf32>
    %c0_46 = arith.constant 0 : index
    %c0_47 = arith.constant 0 : index
    %70 = vector.load %arg4[%c0_46, %c0_47] : memref<8x1xf32, #tpu.memory_space<vmem>>, vector<8x1xf32>
    %71 = vector.broadcast %70 : vector<8x1xf32> to vector<8x256xf32>
    %72 = arith.addf %69, %71 : vector<8x256xf32>
    %cst_48 = arith.constant 0.000000e+00 : f32
    %73 = vector.broadcast %cst_48 : f32 to vector<8x256xf32>
    %74 = arith.maximumf %72, %73 : vector<8x256xf32>
    %c0_49 = arith.constant 0 : index
    %c128_50 = arith.constant 128 : index
    %75 = vector.load %arg9[%c0_49, %c128_50] : memref<8x512xf32, #tpu.memory_space<vmem>>, vector<8x256xf32>
    tpu.vector_store %arg9[%c0_49, %c128_50], %74 {strides = array<i32>} : memref<8x512xf32, #tpu.memory_space<vmem>>, vector<8x256xf32>,
    %c0_51 = arith.constant 0 : index
    %c111_52 = arith.constant 111 : index
    %76 = vector.load %arg9[%c0_51, %c111_52] : memref<8x512xf32, #tpu.memory_space<vmem>>, vector<8x256xf32>
    %c1_i32_53 = arith.constant 1 : i32
    %77 = vector.broadcast %c1_i32_53 : i32 to vector<8x256xi32>
    %78 = arith.cmpi sge, %18, %77 : vector<8x256xi32>
    %cst_54 = arith.constant 0.000000e+00 : f32
    %79 = vector.broadcast %cst_54 : f32 to vector<8x256xf32>
    %80 = arith.select %78, %76, %79 : vector<8x256xi1>, vector<8x256xf32>
    %c0_55 = arith.constant 0 : index
    %c0_56 = arith.constant 0 : index
    %81 = vector.load %arg10[%c0_55, %c0_56] : memref<72x256xf32, #tpu.memory_space<vmem>>, vector<8x256xf32>
    tpu.vector_store %arg10[%c0_55, %c0_56], %80 {strides = array<i32>} : memref<72x256xf32, #tpu.memory_space<vmem>>, vector<8x256xf32>,
    %c0_57 = arith.constant 0 : index
    %c112_58 = arith.constant 112 : index
    %82 = vector.load %arg9[%c0_57, %c112_58] : memref<8x512xf32, #tpu.memory_space<vmem>>, vector<8x256xf32>
    %c8_59 = arith.constant 8 : index
    %c0_60 = arith.constant 0 : index
    %83 = vector.load %arg10[%c8_59, %c0_60] : memref<72x256xf32, #tpu.memory_space<vmem>>, vector<8x256xf32>
    tpu.vector_store %arg10[%c8_59, %c0_60], %82 {strides = array<i32>} : memref<72x256xf32, #tpu.memory_space<vmem>>, vector<8x256xf32>,
    %c0_61 = arith.constant 0 : index
    %c113_62 = arith.constant 113 : index
    %84 = vector.load %arg9[%c0_61, %c113_62] : memref<8x512xf32, #tpu.memory_space<vmem>>, vector<8x256xf32>
    %c15_i32_63 = arith.constant 15 : i32
    %85 = vector.broadcast %c15_i32_63 : i32 to vector<8x256xi32>
    %86 = arith.cmpi slt, %18, %85 : vector<8x256xi32>
    %cst_64 = arith.constant 0.000000e+00 : f32
    %87 = vector.broadcast %cst_64 : f32 to vector<8x256xf32>
    %88 = arith.select %86, %84, %87 : vector<8x256xi1>, vector<8x256xf32>
    %c16_65 = arith.constant 16 : index
    %c0_66 = arith.constant 0 : index
    %89 = vector.load %arg10[%c16_65, %c0_66] : memref<72x256xf32, #tpu.memory_space<vmem>>, vector<8x256xf32>
    tpu.vector_store %arg10[%c16_65, %c0_66], %88 {strides = array<i32>} : memref<72x256xf32, #tpu.memory_space<vmem>>, vector<8x256xf32>,
    %c0_67 = arith.constant 0 : index
    %c127_68 = arith.constant 127 : index
    %90 = vector.load %arg9[%c0_67, %c127_68] : memref<8x512xf32, #tpu.memory_space<vmem>>, vector<8x256xf32>
    %c1_i32_69 = arith.constant 1 : i32
    %91 = vector.broadcast %c1_i32_69 : i32 to vector<8x256xi32>
    %92 = arith.cmpi sge, %18, %91 : vector<8x256xi32>
    %cst_70 = arith.constant 0.000000e+00 : f32
    %93 = vector.broadcast %cst_70 : f32 to vector<8x256xf32>
    %94 = arith.select %92, %90, %93 : vector<8x256xi1>, vector<8x256xf32>
    %c24_71 = arith.constant 24 : index
    %c0_72 = arith.constant 0 : index
    %95 = vector.load %arg10[%c24_71, %c0_72] : memref<72x256xf32, #tpu.memory_space<vmem>>, vector<8x256xf32>
    tpu.vector_store %arg10[%c24_71, %c0_72], %94 {strides = array<i32>} : memref<72x256xf32, #tpu.memory_space<vmem>>, vector<8x256xf32>,
    %c0_73 = arith.constant 0 : index
    %c128_74 = arith.constant 128 : index
    %96 = vector.load %arg9[%c0_73, %c128_74] : memref<8x512xf32, #tpu.memory_space<vmem>>, vector<8x256xf32>
    %c32_75 = arith.constant 32 : index
    %c0_76 = arith.constant 0 : index
    %97 = vector.load %arg10[%c32_75, %c0_76] : memref<72x256xf32, #tpu.memory_space<vmem>>, vector<8x256xf32>
    tpu.vector_store %arg10[%c32_75, %c0_76], %96 {strides = array<i32>} : memref<72x256xf32, #tpu.memory_space<vmem>>, vector<8x256xf32>,
    %c0_77 = arith.constant 0 : index
    %c129_78 = arith.constant 129 : index
    %98 = vector.load %arg9[%c0_77, %c129_78] : memref<8x512xf32, #tpu.memory_space<vmem>>, vector<8x256xf32>
    %c15_i32_79 = arith.constant 15 : i32
    %99 = vector.broadcast %c15_i32_79 : i32 to vector<8x256xi32>
    %100 = arith.cmpi slt, %18, %99 : vector<8x256xi32>
    %cst_80 = arith.constant 0.000000e+00 : f32
    %101 = vector.broadcast %cst_80 : f32 to vector<8x256xf32>
    %102 = arith.select %100, %98, %101 : vector<8x256xi1>, vector<8x256xf32>
    %c40_81 = arith.constant 40 : index
    %c0_82 = arith.constant 0 : index
    %103 = vector.load %arg10[%c40_81, %c0_82] : memref<72x256xf32, #tpu.memory_space<vmem>>, vector<8x256xf32>
    tpu.vector_store %arg10[%c40_81, %c0_82], %102 {strides = array<i32>} : memref<72x256xf32, #tpu.memory_space<vmem>>, vector<8x256xf32>,
    %c0_83 = arith.constant 0 : index
    %c143_84 = arith.constant 143 : index
    %104 = vector.load %arg9[%c0_83, %c143_84] : memref<8x512xf32, #tpu.memory_space<vmem>>, vector<8x256xf32>
    %c1_i32_85 = arith.constant 1 : i32
    %105 = vector.broadcast %c1_i32_85 : i32 to vector<8x256xi32>
    %106 = arith.cmpi sge, %18, %105 : vector<8x256xi32>
    %cst_86 = arith.constant 0.000000e+00 : f32
    %107 = vector.broadcast %cst_86 : f32 to vector<8x256xf32>
    %108 = arith.select %106, %104, %107 : vector<8x256xi1>, vector<8x256xf32>
    %c48_87 = arith.constant 48 : index
    %c0_88 = arith.constant 0 : index
    %109 = vector.load %arg10[%c48_87, %c0_88] : memref<72x256xf32, #tpu.memory_space<vmem>>, vector<8x256xf32>
    tpu.vector_store %arg10[%c48_87, %c0_88], %108 {strides = array<i32>} : memref<72x256xf32, #tpu.memory_space<vmem>>, vector<8x256xf32>,
    %c0_89 = arith.constant 0 : index
    %c144_90 = arith.constant 144 : index
    %110 = vector.load %arg9[%c0_89, %c144_90] : memref<8x512xf32, #tpu.memory_space<vmem>>, vector<8x256xf32>
    %c56_91 = arith.constant 56 : index
    %c0_92 = arith.constant 0 : index
    %111 = vector.load %arg10[%c56_91, %c0_92] : memref<72x256xf32, #tpu.memory_space<vmem>>, vector<8x256xf32>
    tpu.vector_store %arg10[%c56_91, %c0_92], %110 {strides = array<i32>} : memref<72x256xf32, #tpu.memory_space<vmem>>, vector<8x256xf32>,
    %c0_93 = arith.constant 0 : index
    %c145_94 = arith.constant 145 : index
    %112 = vector.load %arg9[%c0_93, %c145_94] : memref<8x512xf32, #tpu.memory_space<vmem>>, vector<8x256xf32>
    %c15_i32_95 = arith.constant 15 : i32
    %113 = vector.broadcast %c15_i32_95 : i32 to vector<8x256xi32>
    %114 = arith.cmpi slt, %18, %113 : vector<8x256xi32>
    %cst_96 = arith.constant 0.000000e+00 : f32
    %115 = vector.broadcast %cst_96 : f32 to vector<8x256xf32>
    %116 = arith.select %114, %112, %115 : vector<8x256xi1>, vector<8x256xf32>
    %c64_97 = arith.constant 64 : index
    %c0_98 = arith.constant 0 : index
    %117 = vector.load %arg10[%c64_97, %c0_98] : memref<72x256xf32, #tpu.memory_space<vmem>>, vector<8x256xf32>
    tpu.vector_store %arg10[%c64_97, %c0_98], %116 {strides = array<i32>} : memref<72x256xf32, #tpu.memory_space<vmem>>, vector<8x256xf32>,
    %c0_99 = arith.constant 0 : index
    %c0_100 = arith.constant 0 : index
    %118 = vector.load %arg5[%c0_99, %c0_100] : memref<8x72xf32, #tpu.memory_space<vmem>>, vector<8x72xf32>
    %c0_101 = arith.constant 0 : index
    %c0_102 = arith.constant 0 : index
    %119 = vector.load %arg10[%c0_101, %c0_102] : memref<72x256xf32, #tpu.memory_space<vmem>>, vector<72x256xf32>
    %cst_103 = arith.constant dense<0.000000e+00> : vector<8x256xf32>
    %120 = tpu.matmul %118, %119, %cst_103 {dimension_numbers = #tpu.dot_dimension_numbers<[1], [0], [0], [1], [0, 0, 1, 1], [], []>} : vector<8x72xf32>, vector<72x256xf32>, vector<8x256xf32> -> vector<8x256xf32>
    %c0_104 = arith.constant 0 : index
    %c0_105 = arith.constant 0 : index
    %121 = vector.load %arg6[%c0_104, %c0_105] : memref<8x1xf32, #tpu.memory_space<vmem>>, vector<8x1xf32>
    %122 = vector.broadcast %121 : vector<8x1xf32> to vector<8x256xf32>
    %123 = arith.mulf %120, %122 : vector<8x256xf32>
    %c0_106 = arith.constant 0 : index
    %c0_107 = arith.constant 0 : index
    %124 = vector.load %arg7[%c0_106, %c0_107] : memref<8x1xf32, #tpu.memory_space<vmem>>, vector<8x1xf32>
    %125 = vector.broadcast %124 : vector<8x1xf32> to vector<8x256xf32>
    %126 = arith.addf %123, %125 : vector<8x256xf32>
    %127 = arith.addf %126, %20 : vector<8x256xf32>
    %cst_108 = arith.constant 0.000000e+00 : f32
    %128 = vector.broadcast %cst_108 : f32 to vector<8x256xf32>
    %129 = arith.maximumf %127, %128 : vector<8x256xf32>
    %c0_109 = arith.constant 0 : index
    %c0_110 = arith.constant 0 : index
    %c0_111 = arith.constant 0 : index
    %130 = vector.load %arg8[%c0_109, %c0_110, %c0_111] : memref<1x8x256xf32, #tpu.memory_space<vmem>>, vector<1x8x256xf32>
    %131 = vector.shape_cast %130 : vector<1x8x256xf32> to vector<8x256xf32>
    %132 = vector.shape_cast %129 : vector<8x256xf32> to vector<1x8x256xf32>
    tpu.vector_store %arg8[%c0_109, %c0_110, %c0_111], %132 {strides = array<i32>} : memref<1x8x256xf32, #tpu.memory_space<vmem>>, vector<1x8x256xf32>,
    return
  }
  func.func @transform_0(%arg0: i32) -> (i32, i32, i32) {
    %c0_i32 = arith.constant 0 : i32
    %c0_i32_0 = arith.constant 0 : i32
    %c0_i32_1 = arith.constant 0 : i32
    return %arg0, %c0_i32, %c0_i32_0 : i32, i32, i32
  }
  func.func @transform_1(%arg0: i32) -> (i32, i32) {
    %c0_i32 = arith.constant 0 : i32
    %c0_i32_0 = arith.constant 0 : i32
    %c0_i32_1 = arith.constant 0 : i32
    return %c0_i32, %c0_i32_0 : i32, i32
  }
  func.func @transform_2(%arg0: i32) -> (i32, i32) {
    %c0_i32 = arith.constant 0 : i32
    %c0_i32_0 = arith.constant 0 : i32
    %c0_i32_1 = arith.constant 0 : i32
    return %c0_i32, %c0_i32_0 : i32, i32
  }
  func.func @transform_3(%arg0: i32) -> (i32, i32) {
    %c0_i32 = arith.constant 0 : i32
    %c0_i32_0 = arith.constant 0 : i32
    %c0_i32_1 = arith.constant 0 : i32
    return %c0_i32, %c0_i32_0 : i32, i32
  }
  func.func @transform_4(%arg0: i32) -> (i32, i32) {
    %c0_i32 = arith.constant 0 : i32
    %c0_i32_0 = arith.constant 0 : i32
    %c0_i32_1 = arith.constant 0 : i32
    return %c0_i32, %c0_i32_0 : i32, i32
  }
  func.func @transform_5(%arg0: i32) -> (i32, i32) {
    %c0_i32 = arith.constant 0 : i32
    %c0_i32_0 = arith.constant 0 : i32
    %c0_i32_1 = arith.constant 0 : i32
    return %c0_i32, %c0_i32_0 : i32, i32
  }
  func.func @transform_6(%arg0: i32) -> (i32, i32) {
    %c0_i32 = arith.constant 0 : i32
    %c0_i32_0 = arith.constant 0 : i32
    %c0_i32_1 = arith.constant 0 : i32
    return %c0_i32, %c0_i32_0 : i32, i32
  }
  func.func @transform_7(%arg0: i32) -> (i32, i32, i32) {
    %c0_i32 = arith.constant 0 : i32
    %c0_i32_0 = arith.constant 0 : i32
    %c0_i32_1 = arith.constant 0 : i32
    return %arg0, %c0_i32, %c0_i32_0 : i32, i32, i32
  }
}

</mosaic_0001>

<llo_original>
// kernel: tpu_custom_call.1
$region0: #{tpu_custom_call.1}
  #allocation0 [shape = 'u32[]', space=smem, size = 0x4, offset = 0x4, fixed_abs, tag = 'smem constant byte address 0x4 - core index']
  #allocation1 [shape = 'u32[144,128]{1,0:T(1,128)}', space=vmem, size = 0x12000, scoped, tag = 'internal scratch']
  #allocation2 [shape = 'f32[8,512]{1,0:T(8,128)}', space=vmem, size = 0x4000, scoped, tag = 'scratch operand']
  #allocation3 [shape = 'f32[72,256]{1,0:T(8,128)}', space=vmem, size = 0x12000, scoped, tag = 'scratch operand']
  %s0 = inlined_call_operand.vmem [shape: f32[2,8,256], index: 0, kind: input, shape index: {}]
  %s1 = inlined_call_operand.hbm [shape: f32[8,72], index: 1, kind: input, shape index: {}]
  %s2 = inlined_call_operand.vmem [shape: f32[8,1], index: 2, kind: input, shape index: {}]
  %s3 = inlined_call_operand.vmem [shape: f32[8,1], index: 3, kind: input, shape index: {}]
  %s4 = inlined_call_operand.vmem [shape: f32[8,72], index: 4, kind: input, shape index: {}]
  %s5 = inlined_call_operand.vmem [shape: f32[8,1], index: 5, kind: input, shape index: {}]
  %s6 = inlined_call_operand.vmem [shape: f32[8,1], index: 6, kind: input, shape index: {}]
  %s7 = inlined_call_operand.hbm [shape: f32[2,8,256], index: 7, kind: output, shape index: {}]
  %s8 = sld [smem:[#allocation0]]
  $region65: #{tpu_custom_call.1} parent=0
    _
  %s10 = ssub.s32 1, %s8
  %s11 = scalar_select 0, %s10, %s8
  $region1: #{tpu_custom_call.1} parent=0
    #allocation4 [shape = 'u8[4096]{0}', space=vmem, size = 0x1000, scoped, tag = 'input window, operand 1, single buffered']
    #allocation5 [shape = 's32[2]{0}', space=sflag, size = 0x8, scoped, tag = 'scoped memory for tpu_custom_call.1']
    #allocation6 [shape = 's32[2]{0}', space=sflag, size = 0x8, scoped, tag = 'scoped memory for tpu_custom_call.1']
    #allocation7 [shape = 'u8[16384]{0}', space=vmem, size = 0x4000, scoped, tag = 'output window, operand 0']
    %12 = vsyncpa [#allocation5], 0
    %13 = vsyncpa [#allocation6], 0
    %s14 = scalar_lea.sflag [#allocation6], 1
    %15 = vsyncpa %s14, 0
    loop: start=0, step=1, limit=4
    $region2: #{tpu_custom_call.1} parent=1 // loop_pre_header
      _
    $region3: #{tpu_custom_call.1} parent=1 // loop_header
      %s17 = sphi 0, %s21
      %p18 = scmp.ge.s32.totalorder %s17, 4
      %s27 = sphi 0, %s29
      %s30 = sphi 0, %s27
      %s31 = sphi 0, %s30
      %s47 = sphi 0, %s31
      %s51 = sphi 0, %s51
      %s53 = sphi 0, %s51
      %s54 = sphi 0, %s53
      %s68 = sphi 0, %s54
      %s72 = sphi 0, %s72
      %s74 = sphi 0, %s72
      %s75 = sphi 0, %s74
      %s89 = sphi 0, %s75
      %s93 = sphi 0, %s93
      %s95 = sphi 0, %s93
      %s96 = sphi 0, %s95
      %s110 = sphi 0, %s96
      %s114 = sphi 0, %s114
      %s116 = sphi 0, %s114
      %s117 = sphi 0, %s116
      %s131 = sphi 0, %s117
      %s135 = sphi 0, %s135
      %s137 = sphi 0, %s135
      %s138 = sphi 0, %s137
      %s152 = sphi 0, %s138
      %s156 = sphi 0, %s156
      %s158 = sphi 0, %s156
      %s159 = sphi 0, %s158
      %s173 = sphi 0, %s159
      %s179 = sphi 0, %s181
      %s182 = sphi 0, %s179
      %s183 = sphi 0, %s182
      %s199 = sphi 0, %s183
    $region4: #{tpu_custom_call.1} parent=1 // loop_header_branch
      %20 = sbr.rel (%p18) target = $region8
    $region5: #{tpu_custom_call.1} parent=1 // loop_body
      %s22 = ssub.s32 %s17, 1
      %s23 = ssub.s32 %s17, 2
      %s24 = sadd.s32 %s17, 1
      %s25 = ssub.s32 %s17, %s24
      %p26 = scmp.eq.s32.totalorder %s25, 0
      %s28 = sadd.s32 %s27, 1
      %s29 = scalar_select %p26, %s27, %s28
      %p32 = pneg %p26
      %p33 = scmp.eq.s32.totalorder %s17, 1
      %p34 = por %p32, %p33
      %p35 = scmp.ne.s32.totalorder %s27, %s30
      %p36 = scmp.eq.s32.totalorder %s17, 0
      %p37 = por %p35, %p36
      %p38 = scmp.ne.s32.totalorder %s27, %s30
      %p39 = scmp.eq.s32.totalorder %s22, 1
      %p40 = por %p38, %p39
      %p41 = scmp.ne.s32.totalorder %s30, %s31
      %p42 = scmp.eq.s32.totalorder %s22, 0
      %p43 = por %p41, %p42
      %p44 = scmp.ne.s32.totalorder %s30, %s31
      %p45 = scmp.eq.s32.totalorder %s23, 1
      %p46 = por %p44, %p45
      %p48 = scmp.ne.s32.totalorder %s31, %s47
      %p49 = scmp.eq.s32.totalorder %s23, 0
      %p50 = por %p48, %p49
      %s52 = sadd.s32 %s51, 1
      %p55 = scmp.eq.s32.totalorder %s17, 1
      %p56 = scmp.ne.s32.totalorder %s51, %s53
      %p57 = scmp.eq.s32.totalorder %s17, 0
      %p58 = por %p56, %p57
      %p59 = scmp.ne.s32.totalorder %s51, %s53
      %p60 = scmp.eq.s32.totalorder %s22, 1
      %p61 = por %p59, %p60
      %p62 = scmp.ne.s32.totalorder %s53, %s54
      %p63 = scmp.eq.s32.totalorder %s22, 0
      %p64 = por %p62, %p63
      %p65 = scmp.ne.s32.totalorder %s53, %s54
      %p66 = scmp.eq.s32.totalorder %s23, 1
      %p67 = por %p65, %p66
      %p69 = scmp.ne.s32.totalorder %s54, %s68
      %p70 = scmp.eq.s32.totalorder %s23, 0
      %p71 = por %p69, %p70
      %s73 = sadd.s32 %s72, 1
      %p76 = scmp.eq.s32.totalorder %s17, 1
      %p77 = scmp.ne.s32.totalorder %s72, %s74
      %p78 = scmp.eq.s32.totalorder %s17, 0
      %p79 = por %p77, %p78
      %p80 = scmp.ne.s32.totalorder %s72, %s74
      %p81 = scmp.eq.s32.totalorder %s22, 1
      %p82 = por %p80, %p81
      %p83 = scmp.ne.s32.totalorder %s74, %s75
      %p84 = scmp.eq.s32.totalorder %s22, 0
      %p85 = por %p83, %p84
      %p86 = scmp.ne.s32.totalorder %s74, %s75
      %p87 = scmp.eq.s32.totalorder %s23, 1
      %p88 = por %p86, %p87
      %p90 = scmp.ne.s32.totalorder %s75, %s89
      %p91 = scmp.eq.s32.totalorder %s23, 0
      %p92 = por %p90, %p91
      %s94 = sadd.s32 %s93, 1
      %p97 = scmp.eq.s32.totalorder %s17, 1
      %p98 = scmp.ne.s32.totalorder %s93, %s95
      %p99 = scmp.eq.s32.totalorder %s17, 0
      %p100 = por %p98, %p99
      %p101 = scmp.ne.s32.totalorder %s93, %s95
      %p102 = scmp.eq.s32.totalorder %s22, 1
      %p103 = por %p101, %p102
      %p104 = scmp.ne.s32.totalorder %s95, %s96
      %p105 = scmp.eq.s32.totalorder %s22, 0
      %p106 = por %p104, %p105
      %p107 = scmp.ne.s32.totalorder %s95, %s96
      %p108 = scmp.eq.s32.totalorder %s23, 1
      %p109 = por %p107, %p108
      %p111 = scmp.ne.s32.totalorder %s96, %s110
      %p112 = scmp.eq.s32.totalorder %s23, 0
      %p113 = por %p111, %p112
      %s115 = sadd.s32 %s114, 1
      %p118 = scmp.eq.s32.totalorder %s17, 1
      %p119 = scmp.ne.s32.totalorder %s114, %s116
      %p120 = scmp.eq.s32.totalorder %s17, 0
      %p121 = por %p119, %p120
      %p122 = scmp.ne.s32.totalorder %s114, %s116
      %p123 = scmp.eq.s32.totalorder %s22, 1
      %p124 = por %p122, %p123
      %p125 = scmp.ne.s32.totalorder %s116, %s117
      %p126 = scmp.eq.s32.totalorder %s22, 0
      %p127 = por %p125, %p126
      %p128 = scmp.ne.s32.totalorder %s116, %s117
      %p129 = scmp.eq.s32.totalorder %s23, 1
      %p130 = por %p128, %p129
      %p132 = scmp.ne.s32.totalorder %s117, %s131
      %p133 = scmp.eq.s32.totalorder %s23, 0
      %p134 = por %p132, %p133
      %s136 = sadd.s32 %s135, 1
      %p139 = scmp.eq.s32.totalorder %s17, 1
      %p140 = scmp.ne.s32.totalorder %s135, %s137
      %p141 = scmp.eq.s32.totalorder %s17, 0
      %p142 = por %p140, %p141
      %p143 = scmp.ne.s32.totalorder %s135, %s137
      %p144 = scmp.eq.s32.totalorder %s22, 1
      %p145 = por %p143, %p144
      %p146 = scmp.ne.s32.totalorder %s137, %s138
      %p147 = scmp.eq.s32.totalorder %s22, 0
      %p148 = por %p146, %p147
      %p149 = scmp.ne.s32.totalorder %s137, %s138
      %p150 = scmp.eq.s32.totalorder %s23, 1
      %p151 = por %p149, %p150
      %p153 = scmp.ne.s32.totalorder %s138, %s152
      %p154 = scmp.eq.s32.totalorder %s23, 0
      %p155 = por %p153, %p154
      %s157 = sadd.s32 %s156, 1
      %p160 = scmp.eq.s32.totalorder %s17, 1
      %p161 = scmp.ne.s32.totalorder %s156, %s158
      %p162 = scmp.eq.s32.totalorder %s17, 0
      %p163 = por %p161, %p162
      %p164 = scmp.ne.s32.totalorder %s156, %s158
      %p165 = scmp.eq.s32.totalorder %s22, 1
      %p166 = por %p164, %p165
      %p167 = scmp.ne.s32.totalorder %s158, %s159
      %p168 = scmp.eq.s32.totalorder %s22, 0
      %p169 = por %p167, %p168
      %p170 = scmp.ne.s32.totalorder %s158, %s159
      %p171 = scmp.eq.s32.totalorder %s23, 1
      %p172 = por %p170, %p171
      %p174 = scmp.ne.s32.totalorder %s159, %s173
      %p175 = scmp.eq.s32.totalorder %s23, 0
      %p176 = por %p174, %p175
      %s177 = ssub.s32 %s17, %s24
      %p178 = scmp.eq.s32.totalorder %s177, 0
      %s180 = sadd.s32 %s179, 1
      %s181 = scalar_select %p178, %s179, %s180
      %p184 = pneg %p178
      %p185 = scmp.eq.s32.totalorder %s17, 1
      %p186 = por %p184, %p185
      %p187 = scmp.ne.s32.totalorder %s179, %s182
      %p188 = scmp.eq.s32.totalorder %s17, 0
      %p189 = por %p187, %p188
      %p190 = scmp.ne.s32.totalorder %s179, %s182
      %p191 = scmp.eq.s32.totalorder %s22, 1
      %p192 = por %p190, %p191
      %p193 = scmp.ne.s32.totalorder %s182, %s183
      %p194 = scmp.eq.s32.totalorder %s22, 0
      %p195 = por %p193, %p194
      %p196 = scmp.ne.s32.totalorder %s182, %s183
      %p197 = scmp.eq.s32.totalorder %s23, 1
      %p198 = por %p196, %p197
      %p200 = scmp.ne.s32.totalorder %s183, %s199
      %p201 = scmp.eq.s32.totalorder %s23, 0
      %p202 = por %p200, %p201
      %p203 = scmp.le.s32.totalorder 1, %s17
      %p204 = scmp.lt.s32.totalorder %s17, 3
      %p205 = pnand %p203, %p204
      %p206 = pneg %p205
      // Predicated region
      $region9: #{tpu_custom_call.1} parent=5 // pred_check
        _
      $region10: #{tpu_custom_call.1} parent=5 // pred_check_branch
        %208 = sbr.rel (%p205) target = $region12
      $region11: #{tpu_custom_call.1} parent=5 // pred_region
        %s209 = ssub.s32 %s17, 1
        // Predicated region
        $region13: #{tpu_custom_call.1} parent=11 // pred_check
          %p210 = pneg %p64
        $region14: #{tpu_custom_call.1} parent=11 // pred_check_branch
          %212 = sbr.rel (%p210) target = $region16
        $region15: #{tpu_custom_call.1} parent=11 // pred_region
          %s214 = ssub.s32 128, 128
          %215 = vsyncadd [#allocation5], %s214
          %s217 = sshll.u32 [#allocation4], 4
          %s218 = int_to_ptr.vmem [resolvable:$true] %s217
          %220 = dma.hbm_to_vmem [thread:$0]  %s1, 128, %s218, [#allocation5]
        $region16: #{tpu_custom_call.1} parent=11 // pred_fallthru
          _
        // Predicated region
        $region17: #{tpu_custom_call.1} parent=11 // pred_check
          %p221 = pneg %p85
        $region18: #{tpu_custom_call.1} parent=11 // pred_check_branch
          %223 = sbr.rel (%p221) target = $region20
        $region19: #{tpu_custom_call.1} parent=11 // pred_region
          _
        $region20: #{tpu_custom_call.1} parent=11 // pred_fallthru
          _
        // Predicated region
        $region21: #{tpu_custom_call.1} parent=11 // pred_check
          %p224 = pneg %p106
        $region22: #{tpu_custom_call.1} parent=11 // pred_check_branch
          %226 = sbr.rel (%p224) target = $region24
        $region23: #{tpu_custom_call.1} parent=11 // pred_region
          _
        $region24: #{tpu_custom_call.1} parent=11 // pred_fallthru
          _
        // Predicated region
        $region25: #{tpu_custom_call.1} parent=11 // pred_check
          %p227 = pneg %p127
        $region26: #{tpu_custom_call.1} parent=11 // pred_check_branch
          %229 = sbr.rel (%p227) target = $region28
        $region27: #{tpu_custom_call.1} parent=11 // pred_region
          _
        $region28: #{tpu_custom_call.1} parent=11 // pred_fallthru
          _
        // Predicated region
        $region29: #{tpu_custom_call.1} parent=11 // pred_check
          %p230 = pneg %p148
        $region30: #{tpu_custom_call.1} parent=11 // pred_check_branch
          %232 = sbr.rel (%p230) target = $region32
        $region31: #{tpu_custom_call.1} parent=11 // pred_region
          _
        $region32: #{tpu_custom_call.1} parent=11 // pred_fallthru
          _
        // Predicated region
        $region33: #{tpu_custom_call.1} parent=11 // pred_check
          %p233 = pneg %p169
        $region34: #{tpu_custom_call.1} parent=11 // pred_check_branch
          %235 = sbr.rel (%p233) target = $region36
        $region35: #{tpu_custom_call.1} parent=11 // pred_region
          _
        $region36: #{tpu_custom_call.1} parent=11 // pred_fallthru
          _
      $region12: #{tpu_custom_call.1} parent=5 // pred_fallthru
        _
      %p236 = scmp.lt.s32.totalorder %s17, 2
      // Predicated region
      $region37: #{tpu_custom_call.1} parent=5 // pred_check
        %p237 = pneg %p236
      $region38: #{tpu_custom_call.1} parent=5 // pred_check_branch
        %239 = sbr.rel (%p237) target = $region40
      $region39: #{tpu_custom_call.1} parent=5 // pred_region
        // Predicated region
        $region41: #{tpu_custom_call.1} parent=39 // pred_check
          %p240 = pneg %p37
        $region42: #{tpu_custom_call.1} parent=39 // pred_check_branch
          %242 = sbr.rel (%p240) target = $region44
        $region43: #{tpu_custom_call.1} parent=39 // pred_region
          %p243 = scmp.lt.s32.totalorder %s17, 1
          %s244 = scalar_select %p243, %s17, 1
          %s245 = smul.addr %s244, 2
          %s246 = smul.addr %s245, 8
          %s247 = scalar_lea.vmem %s0, %s246
        $region44: #{tpu_custom_call.1} parent=39 // pred_fallthru
          _
      $region40: #{tpu_custom_call.1} parent=5 // pred_fallthru
        _
      %p248 = scmp.le.s32.totalorder 1, %s17
      %p249 = scmp.lt.s32.totalorder %s17, 3
      %p250 = pnand %p248, %p249
      %p251 = pneg %p250
      // Predicated region
      $region45: #{tpu_custom_call.1} parent=5 // pred_check
        _
      $region46: #{tpu_custom_call.1} parent=5 // pred_check_branch
        %253 = sbr.rel (%p250) target = $region48
      $region47: #{tpu_custom_call.1} parent=5 // pred_region
        %s254 = ssub.s32 %s17, 1
        // Predicated region
        $region49: #{tpu_custom_call.1} parent=47 // pred_check
          %p255 = pneg %p64
        $region50: #{tpu_custom_call.1} parent=47 // pred_check_branch
          %257 = sbr.rel (%p255) target = $region52
        $region51: #{tpu_custom_call.1} parent=47 // pred_region
          %258 = dma.done [#allocation5], 128
        $region52: #{tpu_custom_call.1} parent=47 // pred_fallthru
          _
        %p259 = scmp.lt.s32.totalorder %s22, 1
        %s260 = scalar_select %p259, %s22, 1
        %s261 = smul.addr %s260, 2
        %s262 = smul.addr %s261, 8
        %s263 = scalar_lea.vmem %s0, %s262
        %p264 = pneg %p43
        %p265 = pneg %p40
        %p266 = pneg %p64
        %p267 = pneg %p61
        %p268 = pneg %p85
        %p269 = pneg %p82
        %p270 = pneg %p106
        %p271 = pneg %p103
        %p272 = pneg %p127
        %p273 = pneg %p124
        %p274 = pneg %p148
        %p275 = pneg %p145
        %p276 = pneg %p169
        %p277 = pneg %p166
        %p278 = pneg %p195
        %p279 = pneg %p192
        %s280 = sand.u32 %s182, 1
        %s281 = scalar_lea.sflag [#allocation6], %s280
        %s282 = sand.u32 %s182, 1
        %s283 = smul.addr %s282, 16
        %s284 = scalar_lea.vmem [#allocation7], %s283
        %p285 = scmp.lt.s32.totalorder %s22, 1
        %s286 = scalar_select %p285, %s22, 1
        %s287 = smul.addr %s286, 2
        %s288 = smul.addr %s287, 8
        %s289 = scalar_lea.vmem %s0, %s288
        %290 = vst [vmem:[#allocation2] sm:$0xff] 0.0
        %291 = vst [vmem:[#allocation2 + $0x8] sm:$0xff] 0.0
        %292 = vst [vmem:[#allocation2 + $0x10] sm:$0xff] 0.0
        %293 = vst [vmem:[#allocation2 + $0x18] sm:$0xff] 0.0
        %v294 = vlaneseq
        %v295 = vand.u32 %v294, 127
        %v296 = vadd.s32 %v295, 128
        %vm297 = vcmp.lt.s32.totalorder %v295, 0
        %v298 = vsub.s32 0, %v295
        %v299 = vsel %vm297, %v298, %v295
        %v300 = vshrl.u32 %v299, 4
        %v301 = vand.u32 %v299, 15
        %v302 = vsub.s32 0, %v301
        %v303 = vsel %vm297, %v302, %v301
        %vm304 = vcmp.lt.s32.totalorder %v296, 0
        %v305 = vsub.s32 0, %v296
        %v306 = vsel %vm304, %v305, %v296
        %v307 = vshrl.u32 %v306, 4
        %v308 = vand.u32 %v306, 15
        %v309 = vsub.s32 0, %v308
        %v310 = vsel %vm304, %v309, %v308
        %vm311 = vcmp.ne.s32.totalorder %v303, 0
        %vm312 = vcmp.ne.s32.totalorder %v310, 0
        %vm313 = vcmp.lt.s32.totalorder %v303, 0
        %vm314 = vcmp.lt.s32.totalorder %v310, 0
        %vm315 = vmand %vm313, %vm311
        %vm316 = vmand %vm314, %vm312
        %v317 = vadd.s32 %v303, 16
        %v318 = vadd.s32 %v310, 16
        %v319 = vsel %vm315, %v317, %v303
        %v320 = vsel %vm316, %v318, %v310
        %v321 = vld [vmem:[%s289] sm:$0xff]
        %v322 = vld [vmem:[%s289 + $0x8] sm:$0xff]
        %323 = vst [vmem:[#allocation2 + $0x8] sm:$0xff] %v321
        %324 = vst [vmem:[#allocation2 + $0x10] sm:$0xff] %v322
        %v325 = vld [vmem:[#allocation2] sm:$0xff]
        %v326 = vld [vmem:[#allocation2 + $0x8] sm:$0xff]
        %v327 = vld [vmem:[#allocation2 + $0x10] sm:$0xff]
        %vm328 = vcmp.ge.s32.totalorder %v319, 1
        %vm329 = vcmp.ge.s32.totalorder %v320, 1
        %333 = vrot.lane.b32.xlu0 %v325, 17
        %v334 = vpop.permute.xlu0 %333
        %335 = vrot.lane.b32.xlu0 %v326, 17
        %v336 = vpop.permute.xlu0 %335
        %337 = vrot.lane.b32.xlu0 %v327, 17
        %v338 = vpop.permute.xlu0 %337
        %vm339 = vcmask 138240
        %v340 = vsel %vm339, %v334, %v336
        %v341 = vsel %vm339, %v336, %v338
        %v344 = vsel %vm328, %v340, 0.0
        %v345 = vsel %vm329, %v341, 0.0
        %346 = vst [vmem:[#allocation3] sm:$0xff] %v344
        %347 = vst [vmem:[#allocation3 + $0x8] sm:$0xff] %v345
        %v348 = vld [vmem:[#allocation2] sm:$0xff]
        %v349 = vld [vmem:[#allocation2 + $0x8] sm:$0xff]
        %v350 = vld [vmem:[#allocation2 + $0x10] sm:$0xff]
        %354 = vrot.lane.b32.xlu0 %v348, 16
        %v355 = vpop.permute.xlu0 %354
        %356 = vrot.lane.b32.xlu0 %v349, 16
        %v357 = vpop.permute.xlu0 %356
        %358 = vrot.lane.b32.xlu0 %v350, 16
        %v359 = vpop.permute.xlu0 %358
        %vm360 = vcmask 130048
        %v361 = vsel %vm360, %v355, %v357
        %v362 = vsel %vm360, %v357, %v359
        %365 = vst [vmem:[#allocation3 + $0x10] sm:$0xff] %v361
        %366 = vst [vmem:[#allocation3 + $0x18] sm:$0xff] %v362
        %v367 = vld [vmem:[#allocation2] sm:$0xff]
        %v368 = vld [vmem:[#allocation2 + $0x8] sm:$0xff]
        %v369 = vld [vmem:[#allocation2 + $0x10] sm:$0xff]
        %vm370 = vcmp.lt.s32.totalorder %v319, 15
        %vm371 = vcmp.lt.s32.totalorder %v320, 15
        %375 = vrot.lane.b32.xlu0 %v367, 15
        %v376 = vpop.permute.xlu0 %375
        %377 = vrot.lane.b32.xlu0 %v368, 15
        %v378 = vpop.permute.xlu0 %377
        %379 = vrot.lane.b32.xlu0 %v369, 15
        %v380 = vpop.permute.xlu0 %379
        %vm381 = vcmask 121856
        %v382 = vsel %vm381, %v376, %v378
        %v383 = vsel %vm381, %v378, %v380
        %v386 = vsel %vm370, %v382, 0.0
        %v387 = vsel %vm371, %v383, 0.0
        %388 = vst [vmem:[#allocation3 + $0x20] sm:$0xff] %v386
        %389 = vst [vmem:[#allocation3 + $0x28] sm:$0xff] %v387
        %v390 = vld [vmem:[#allocation2] sm:$0xff]
        %v391 = vld [vmem:[#allocation2 + $0x8] sm:$0xff]
        %v392 = vld [vmem:[#allocation2 + $0x10] sm:$0xff]
        %396 = vrot.lane.b32.xlu0 %v390, 1
        %v397 = vpop.permute.xlu0 %396
        %398 = vrot.lane.b32.xlu0 %v391, 1
        %v399 = vpop.permute.xlu0 %398
        %400 = vrot.lane.b32.xlu0 %v392, 1
        %v401 = vpop.permute.xlu0 %400
        %vm402 = vcmask 7168
        %v403 = vsel %vm402, %v397, %v399
        %v404 = vsel %vm402, %v399, %v401
        %v407 = vsel %vm328, %v403, 0.0
        %v408 = vsel %vm329, %v404, 0.0
        %409 = vst [vmem:[#allocation3 + $0x30] sm:$0xff] %v407
        %410 = vst [vmem:[#allocation3 + $0x38] sm:$0xff] %v408
        %v411 = vld [vmem:[#allocation2 + $0x8] sm:$0xff]
        %v412 = vld [vmem:[#allocation2 + $0x10] sm:$0xff]
        %413 = vst [vmem:[#allocation3 + $0x40] sm:$0xff] %v411
        %414 = vst [vmem:[#allocation3 + $0x48] sm:$0xff] %v412
        %v415 = vld [vmem:[#allocation2 + $0x8] sm:$0xff]
        %v416 = vld [vmem:[#allocation2 + $0x10] sm:$0xff]
        %v417 = vld [vmem:[#allocation2 + $0x18] sm:$0xff]
        %421 = vrot.lane.b32.xlu0 %v415, 127
        %v422 = vpop.permute.xlu0 %421
        %423 = vrot.lane.b32.xlu0 %v416, 127
        %v424 = vpop.permute.xlu0 %423
        %425 = vrot.lane.b32.xlu0 %v417, 127
        %v426 = vpop.permute.xlu0 %425
        %vm427 = vcmask 1039360
        %v428 = vsel %vm427, %v422, %v424
        %v429 = vsel %vm427, %v424, %v426
        %v432 = vsel %vm370, %v428, 0.0
        %v433 = vsel %vm371, %v429, 0.0
        %434 = vst [vmem:[#allocation3 + $0x50] sm:$0xff] %v432
        %435 = vst [vmem:[#allocation3 + $0x58] sm:$0xff] %v433
        %v436 = vld [vmem:[#allocation2 + $0x8] sm:$0xff]
        %v437 = vld [vmem:[#allocation2 + $0x10] sm:$0xff]
        %v438 = vld [vmem:[#allocation2 + $0x18] sm:$0xff]
        %442 = vrot.lane.b32.xlu0 %v436, 113
        %v443 = vpop.permute.xlu0 %442
        %444 = vrot.lane.b32.xlu0 %v437, 113
        %v445 = vpop.permute.xlu0 %444
        %446 = vrot.lane.b32.xlu0 %v438, 113
        %v447 = vpop.permute.xlu0 %446
        %vm448 = vcmask 924672
        %v449 = vsel %vm448, %v443, %v445
        %v450 = vsel %vm448, %v445, %v447
        %v453 = vsel %vm328, %v449, 0.0
        %v454 = vsel %vm329, %v450, 0.0
        %455 = vst [vmem:[#allocation3 + $0x60] sm:$0xff] %v453
        %456 = vst [vmem:[#allocation3 + $0x68] sm:$0xff] %v454
        %v457 = vld [vmem:[#allocation2 + $0x8] sm:$0xff]
        %v458 = vld [vmem:[#allocation2 + $0x10] sm:$0xff]
        %v459 = vld [vmem:[#allocation2 + $0x18] sm:$0xff]
        %463 = vrot.lane.b32.xlu0 %v457, 112
        %v464 = vpop.permute.xlu0 %463
        %465 = vrot.lane.b32.xlu0 %v458, 112
        %v466 = vpop.permute.xlu0 %465
        %467 = vrot.lane.b32.xlu0 %v459, 112
        %v468 = vpop.permute.xlu0 %467
        %vm469 = vcmask 916480
        %v470 = vsel %vm469, %v464, %v466
        %v471 = vsel %vm469, %v466, %v468
        %474 = vst [vmem:[#allocation3 + $0x70] sm:$0xff] %v470
        %475 = vst [vmem:[#allocation3 + $0x78] sm:$0xff] %v471
        %v476 = vld [vmem:[#allocation2 + $0x8] sm:$0xff]
        %v477 = vld [vmem:[#allocation2 + $0x10] sm:$0xff]
        %v478 = vld [vmem:[#allocation2 + $0x18] sm:$0xff]
        %482 = vrot.lane.b32.xlu0 %v476, 111
        %v483 = vpop.permute.xlu0 %482
        %484 = vrot.lane.b32.xlu0 %v477, 111
        %v485 = vpop.permute.xlu0 %484
        %486 = vrot.lane.b32.xlu0 %v478, 111
        %v487 = vpop.permute.xlu0 %486
        %vm488 = vcmask 908288
        %v489 = vsel %vm488, %v483, %v485
        %v490 = vsel %vm488, %v485, %v487
        %v493 = vsel %vm370, %v489, 0.0
        %v494 = vsel %vm371, %v490, 0.0
        %495 = vst [vmem:[#allocation3 + $0x80] sm:$0xff] %v493
        %496 = vst [vmem:[#allocation3 + $0x88] sm:$0xff] %v494
        %v497 = vld [vmem:[#allocation4] sm:$0xff]
        %v498 = vld [vmem:[#allocation3] sm:$0xff]
        %v499 = vld [vmem:[#allocation3 + $0x8] sm:$0xff]
        %v500 = vld [vmem:[#allocation3 + $0x10] sm:$0xff]
        %v501 = vld [vmem:[#allocation3 + $0x18] sm:$0xff]
        %v502 = vld [vmem:[#allocation3 + $0x20] sm:$0xff]
        %v503 = vld [vmem:[#allocation3 + $0x28] sm:$0xff]
        %v504 = vld [vmem:[#allocation3 + $0x30] sm:$0xff]
        %v505 = vld [vmem:[#allocation3 + $0x38] sm:$0xff]
        %v506 = vld [vmem:[#allocation3 + $0x40] sm:$0xff]
        %v507 = vld [vmem:[#allocation3 + $0x48] sm:$0xff]
        %v508 = vld [vmem:[#allocation3 + $0x50] sm:$0xff]
        %v509 = vld [vmem:[#allocation3 + $0x58] sm:$0xff]
        %v510 = vld [vmem:[#allocation3 + $0x60] sm:$0xff]
        %v511 = vld [vmem:[#allocation3 + $0x68] sm:$0xff]
        %v512 = vld [vmem:[#allocation3 + $0x70] sm:$0xff]
        %v513 = vld [vmem:[#allocation3 + $0x78] sm:$0xff]
        %v514 = vld [vmem:[#allocation3 + $0x80] sm:$0xff]
        %v515 = vld [vmem:[#allocation3 + $0x88] sm:$0xff]
        %vm516 = vcmask 588800
        %v518 = vsel %vm516, %v497, 0
        %520 = vmatprep.subr.mxu0 %v499
        %521 = vmatpush1.msra.mxu0 %v498
        %522 = vmatprep.subr.mxu0 %v501
        %523 = vmatpush1.msra.mxu0 %v500
        %524 = vmatprep.subr.mxu0 %v503
        %525 = vmatpush1.msra.mxu0 %v502
        %526 = vmatprep.subr.mxu0 %v505
        %527 = vmatpush1.msra.mxu0 %v504
        %528 = vmatprep.subr.mxu0 %v507
        %529 = vmatpush1.msra.mxu0 %v506
        %530 = vmatprep.subr.mxu0 %v509
        %531 = vmatpush1.msra.mxu0 %v508
        %532 = vmatprep.subr.mxu0 %v511
        %533 = vmatpush1.msra.mxu0 %v510
        %534 = vmatprep.subr.mxu0 %v513
        %535 = vmatpush1.msra.mxu0 %v512
        %536 = vmatprep.subr.mxu0 %v515
        %537 = vmatpush1.msra.mxu0 %v514
        %538 = vmatprep.subr.mxu0 0.0
        %539 = vmatpush1.msra.mxu0 0.0
        %540 = vmatprep.subr.mxu0 0.0
        %541 = vmatpush1.msra.mxu0 0.0
        %542 = vmatprep.subr.mxu0 0.0
        %543 = vmatpush1.msra.mxu0 0.0
        %544 = vmatprep.subr.mxu0 0.0
        %545 = vmatpush1.msra.mxu0 0.0
        %546 = vmatprep.subr.mxu0 0.0
        %547 = vmatpush1.msra.mxu0 0.0
        %548 = vmatprep.subr.mxu0 0.0
        %549 = vmatpush1.msra.mxu0 0.0
        %550 = vmatprep.subr.mxu0 0.0
        %551 = vmatpush1.msra.mxu0 0.0
        %552 = vmatprep.subr.mxu0 0.0
        %553 = vmatpush1.msra.mxu0 0.0
        %554 = vmatprep.subr.mxu0 0.0
        %555 = vmatpush1.msra.mxu0 0.0
        %556 = vmatprep.subr.mxu0 0.0
        %557 = vmatpush1.msra.mxu0 0.0
        %558 = vmatprep.subr.mxu0 0.0
        %559 = vmatpush1.msra.mxu0 0.0
        %560 = vmatprep.subr.mxu0 0.0
        %561 = vmatpush1.msra.mxu0 0.0
        %562 = vmatprep.subr.mxu0 0.0
        %563 = vmatpush1.msra.mxu0 0.0
        %564 = vmatprep.subr.mxu0 0.0
        %565 = vmatpush1.msra.mxu0 0.0
        %566 = vmatprep.subr.mxu0 0.0
        %567 = vmatpush1.msra.mxu0 0.0
        %568 = vmatprep.subr.mxu0 0.0
        %569 = vmatpush1.msra.mxu0 0.0
        %570 = vmatprep.subr.mxu0 0.0
        %571 = vmatpush1.msra.mxu0 0.0
        %572 = vmatprep.subr.mxu0 0.0
        %573 = vmatpush1.msra.mxu0 0.0
        %574 = vmatprep.subr.mxu0 0.0
        %575 = vmatpush1.msra.mxu0 0.0
        %576 = vmatprep.subr.mxu0 0.0
        %577 = vmatpush1.msra.mxu0 0.0
        %578 = vmatprep.subr.mxu0 0.0
        %579 = vmatpush1.msra.mxu0 0.0
        %580 = vmatprep.subr.mxu0 0.0
        %581 = vmatpush1.msra.mxu0 0.0
        %582 = vmatprep.subr.mxu0 0.0
        %583 = vmatpush1.msra.mxu0 0.0
        %584 = vmatprep.mubr.f32.mxu0 0.0
        %585 = vmatmul.mubr.f32.gmra.mrb[0].mxu0 %v518
        %v586 = vpop.f32.mrb[0].mxu0
        %v587 = vadd.f32 0.0, %v586
        %v588 = vpop.f32.mrb[0].mxu0
        %v589 = vadd.f32 0.0, %v588
        %590 = vdwg.mxu0
        %v591 = vld [vmem:[%s2] sm:$0xff]
        %593 = vset.pattern.permute.xlu0 0
        %594 = vperm.xlu0 %593, %v591
        %v595 = vpop.permute.xlu0 %594
        %v597 = vmul.f32 %v587, %v595
        %v598 = vmul.f32 %v589, %v595
        %v599 = vld [vmem:[%s3] sm:$0xff]
        %601 = vset.pattern.permute.xlu0 0
        %602 = vperm.xlu0 %601, %v599
        %v603 = vpop.permute.xlu0 %602
        %v605 = vadd.f32 %v597, %v603
        %v606 = vadd.f32 %v598, %v603
        %v607 = vmax.f32 %v605, 0.0
        %v608 = vmax.f32 %v606, 0.0
        %609 = vst [vmem:[#allocation2 + $0x8] sm:$0xff] %v607
        %610 = vst [vmem:[#allocation2 + $0x10] sm:$0xff] %v608
        %v611 = vld [vmem:[#allocation2] sm:$0xff]
        %v612 = vld [vmem:[#allocation2 + $0x8] sm:$0xff]
        %v613 = vld [vmem:[#allocation2 + $0x10] sm:$0xff]
        %617 = vrot.lane.b32.xlu0 %v611, 17
        %v618 = vpop.permute.xlu0 %617
        %619 = vrot.lane.b32.xlu0 %v612, 17
        %v620 = vpop.permute.xlu0 %619
        %621 = vrot.lane.b32.xlu0 %v613, 17
        %v622 = vpop.permute.xlu0 %621
        %v623 = vsel %vm339, %v618, %v620
        %v624 = vsel %vm339, %v620, %v622
        %v627 = vsel %vm328, %v623, 0.0
        %v628 = vsel %vm329, %v624, 0.0
        %629 = vst [vmem:[#allocation3] sm:$0xff] %v627
        %630 = vst [vmem:[#allocation3 + $0x8] sm:$0xff] %v628
        %v631 = vld [vmem:[#allocation2] sm:$0xff]
        %v632 = vld [vmem:[#allocation2 + $0x8] sm:$0xff]
        %v633 = vld [vmem:[#allocation2 + $0x10] sm:$0xff]
        %637 = vrot.lane.b32.xlu0 %v631, 16
        %v638 = vpop.permute.xlu0 %637
        %639 = vrot.lane.b32.xlu0 %v632, 16
        %v640 = vpop.permute.xlu0 %639
        %641 = vrot.lane.b32.xlu0 %v633, 16
        %v642 = vpop.permute.xlu0 %641
        %v643 = vsel %vm360, %v638, %v640
        %v644 = vsel %vm360, %v640, %v642
        %647 = vst [vmem:[#allocation3 + $0x10] sm:$0xff] %v643
        %648 = vst [vmem:[#allocation3 + $0x18] sm:$0xff] %v644
        %v649 = vld [vmem:[#allocation2] sm:$0xff]
        %v650 = vld [vmem:[#allocation2 + $0x8] sm:$0xff]
        %v651 = vld [vmem:[#allocation2 + $0x10] sm:$0xff]
        %655 = vrot.lane.b32.xlu0 %v649, 15
        %v656 = vpop.permute.xlu0 %655
        %657 = vrot.lane.b32.xlu0 %v650, 15
        %v658 = vpop.permute.xlu0 %657
        %659 = vrot.lane.b32.xlu0 %v651, 15
        %v660 = vpop.permute.xlu0 %659
        %v661 = vsel %vm381, %v656, %v658
        %v662 = vsel %vm381, %v658, %v660
        %v665 = vsel %vm370, %v661, 0.0
        %v666 = vsel %vm371, %v662, 0.0
        %667 = vst [vmem:[#allocation3 + $0x20] sm:$0xff] %v665
        %668 = vst [vmem:[#allocation3 + $0x28] sm:$0xff] %v666
        %v669 = vld [vmem:[#allocation2] sm:$0xff]
        %v670 = vld [vmem:[#allocation2 + $0x8] sm:$0xff]
        %v671 = vld [vmem:[#allocation2 + $0x10] sm:$0xff]
        %675 = vrot.lane.b32.xlu0 %v669, 1
        %v676 = vpop.permute.xlu0 %675
        %677 = vrot.lane.b32.xlu0 %v670, 1
        %v678 = vpop.permute.xlu0 %677
        %679 = vrot.lane.b32.xlu0 %v671, 1
        %v680 = vpop.permute.xlu0 %679
        %v681 = vsel %vm402, %v676, %v678
        %v682 = vsel %vm402, %v678, %v680
        %v685 = vsel %vm328, %v681, 0.0
        %v686 = vsel %vm329, %v682, 0.0
        %687 = vst [vmem:[#allocation3 + $0x30] sm:$0xff] %v685
        %688 = vst [vmem:[#allocation3 + $0x38] sm:$0xff] %v686
        %v689 = vld [vmem:[#allocation2 + $0x8] sm:$0xff]
        %v690 = vld [vmem:[#allocation2 + $0x10] sm:$0xff]
        %691 = vst [vmem:[#allocation3 + $0x40] sm:$0xff] %v689
        %692 = vst [vmem:[#allocation3 + $0x48] sm:$0xff] %v690
        %v693 = vld [vmem:[#allocation2 + $0x8] sm:$0xff]
        %v694 = vld [vmem:[#allocation2 + $0x10] sm:$0xff]
        %v695 = vld [vmem:[#allocation2 + $0x18] sm:$0xff]
        %699 = vrot.lane.b32.xlu0 %v693, 127
        %v700 = vpop.permute.xlu0 %699
        %701 = vrot.lane.b32.xlu0 %v694, 127
        %v702 = vpop.permute.xlu0 %701
        %703 = vrot.lane.b32.xlu0 %v695, 127
        %v704 = vpop.permute.xlu0 %703
        %v705 = vsel %vm427, %v700, %v702
        %v706 = vsel %vm427, %v702, %v704
        %v709 = vsel %vm370, %v705, 0.0
        %v710 = vsel %vm371, %v706, 0.0
        %711 = vst [vmem:[#allocation3 + $0x50] sm:$0xff] %v709
        %712 = vst [vmem:[#allocation3 + $0x58] sm:$0xff] %v710
        %v713 = vld [vmem:[#allocation2 + $0x8] sm:$0xff]
        %v714 = vld [vmem:[#allocation2 + $0x10] sm:$0xff]
        %v715 = vld [vmem:[#allocation2 + $0x18] sm:$0xff]
        %719 = vrot.lane.b32.xlu0 %v713, 113
        %v720 = vpop.permute.xlu0 %719
        %721 = vrot.lane.b32.xlu0 %v714, 113
        %v722 = vpop.permute.xlu0 %721
        %723 = vrot.lane.b32.xlu0 %v715, 113
        %v724 = vpop.permute.xlu0 %723
        %v725 = vsel %vm448, %v720, %v722
        %v726 = vsel %vm448, %v722, %v724
        %v729 = vsel %vm328, %v725, 0.0
        %v730 = vsel %vm329, %v726, 0.0
        %731 = vst [vmem:[#allocation3 + $0x60] sm:$0xff] %v729
        %732 = vst [vmem:[#allocation3 + $0x68] sm:$0xff] %v730
        %v733 = vld [vmem:[#allocation2 + $0x8] sm:$0xff]
        %v734 = vld [vmem:[#allocation2 + $0x10] sm:$0xff]
        %v735 = vld [vmem:[#allocation2 + $0x18] sm:$0xff]
        %739 = vrot.lane.b32.xlu0 %v733, 112
        %v740 = vpop.permute.xlu0 %739
        %741 = vrot.lane.b32.xlu0 %v734, 112
        %v742 = vpop.permute.xlu0 %741
        %743 = vrot.lane.b32.xlu0 %v735, 112
        %v744 = vpop.permute.xlu0 %743
        %v745 = vsel %vm469, %v740, %v742
        %v746 = vsel %vm469, %v742, %v744
        %749 = vst [vmem:[#allocation3 + $0x70] sm:$0xff] %v745
        %750 = vst [vmem:[#allocation3 + $0x78] sm:$0xff] %v746
        %v751 = vld [vmem:[#allocation2 + $0x8] sm:$0xff]
        %v752 = vld [vmem:[#allocation2 + $0x10] sm:$0xff]
        %v753 = vld [vmem:[#allocation2 + $0x18] sm:$0xff]
        %757 = vrot.lane.b32.xlu0 %v751, 111
        %v758 = vpop.permute.xlu0 %757
        %759 = vrot.lane.b32.xlu0 %v752, 111
        %v760 = vpop.permute.xlu0 %759
        %761 = vrot.lane.b32.xlu0 %v753, 111
        %v762 = vpop.permute.xlu0 %761
        %v763 = vsel %vm488, %v758, %v760
        %v764 = vsel %vm488, %v760, %v762
        %v767 = vsel %vm370, %v763, 0.0
        %v768 = vsel %vm371, %v764, 0.0
        %769 = vst [vmem:[#allocation3 + $0x80] sm:$0xff] %v767
        %770 = vst [vmem:[#allocation3 + $0x88] sm:$0xff] %v768
        %v771 = vld [vmem:[%s4] sm:$0xff]
        %v772 = vld [vmem:[#allocation3] sm:$0xff]
        %v773 = vld [vmem:[#allocation3 + $0x8] sm:$0xff]
        %v774 = vld [vmem:[#allocation3 + $0x10] sm:$0xff]
        %v775 = vld [vmem:[#allocation3 + $0x18] sm:$0xff]
        %v776 = vld [vmem:[#allocation3 + $0x20] sm:$0xff]
        %v777 = vld [vmem:[#allocation3 + $0x28] sm:$0xff]
        %v778 = vld [vmem:[#allocation3 + $0x30] sm:$0xff]
        %v779 = vld [vmem:[#allocation3 + $0x38] sm:$0xff]
        %v780 = vld [vmem:[#allocation3 + $0x40] sm:$0xff]
        %v781 = vld [vmem:[#allocation3 + $0x48] sm:$0xff]
        %v782 = vld [vmem:[#allocation3 + $0x50] sm:$0xff]
        %v783 = vld [vmem:[#allocation3 + $0x58] sm:$0xff]
        %v784 = vld [vmem:[#allocation3 + $0x60] sm:$0xff]
        %v785 = vld [vmem:[#allocation3 + $0x68] sm:$0xff]
        %v786 = vld [vmem:[#allocation3 + $0x70] sm:$0xff]
        %v787 = vld [vmem:[#allocation3 + $0x78] sm:$0xff]
        %v788 = vld [vmem:[#allocation3 + $0x80] sm:$0xff]
        %v789 = vld [vmem:[#allocation3 + $0x88] sm:$0xff]
        %v791 = vsel %vm516, %v771, 0
        %793 = vmatprep.subr.mxu0 %v773
        %794 = vmatpush1.msra.mxu0 %v772
        %795 = vmatprep.subr.mxu0 %v775
        %796 = vmatpush1.msra.mxu0 %v774
        %797 = vmatprep.subr.mxu0 %v777
        %798 = vmatpush1.msra.mxu0 %v776
        %799 = vmatprep.subr.mxu0 %v779
        %800 = vmatpush1.msra.mxu0 %v778
        %801 = vmatprep.subr.mxu0 %v781
        %802 = vmatpush1.msra.mxu0 %v780
        %803 = vmatprep.subr.mxu0 %v783
        %804 = vmatpush1.msra.mxu0 %v782
        %805 = vmatprep.subr.mxu0 %v785
        %806 = vmatpush1.msra.mxu0 %v784
        %807 = vmatprep.subr.mxu0 %v787
        %808 = vmatpush1.msra.mxu0 %v786
        %809 = vmatprep.subr.mxu0 %v789
        %810 = vmatpush1.msra.mxu0 %v788
        %811 = vmatprep.subr.mxu0 0.0
        %812 = vmatpush1.msra.mxu0 0.0
        %813 = vmatprep.subr.mxu0 0.0
        %814 = vmatpush1.msra.mxu0 0.0
        %815 = vmatprep.subr.mxu0 0.0
        %816 = vmatpush1.msra.mxu0 0.0
        %817 = vmatprep.subr.mxu0 0.0
        %818 = vmatpush1.msra.mxu0 0.0
        %819 = vmatprep.subr.mxu0 0.0
        %820 = vmatpush1.msra.mxu0 0.0
        %821 = vmatprep.subr.mxu0 0.0
        %822 = vmatpush1.msra.mxu0 0.0
        %823 = vmatprep.subr.mxu0 0.0
        %824 = vmatpush1.msra.mxu0 0.0
        %825 = vmatprep.subr.mxu0 0.0
        %826 = vmatpush1.msra.mxu0 0.0
        %827 = vmatprep.subr.mxu0 0.0
        %828 = vmatpush1.msra.mxu0 0.0
        %829 = vmatprep.subr.mxu0 0.0
        %830 = vmatpush1.msra.mxu0 0.0
        %831 = vmatprep.subr.mxu0 0.0
        %832 = vmatpush1.msra.mxu0 0.0
        %833 = vmatprep.subr.mxu0 0.0
        %834 = vmatpush1.msra.mxu0 0.0
        %835 = vmatprep.subr.mxu0 0.0
        %836 = vmatpush1.msra.mxu0 0.0
        %837 = vmatprep.subr.mxu0 0.0
        %838 = vmatpush1.msra.mxu0 0.0
        %839 = vmatprep.subr.mxu0 0.0
        %840 = vmatpush1.msra.mxu0 0.0
        %841 = vmatprep.subr.mxu0 0.0
        %842 = vmatpush1.msra.mxu0 0.0
        %843 = vmatprep.subr.mxu0 0.0
        %844 = vmatpush1.msra.mxu0 0.0
        %845 = vmatprep.subr.mxu0 0.0
        %846 = vmatpush1.msra.mxu0 0.0
        %847 = vmatprep.subr.mxu0 0.0
        %848 = vmatpush1.msra.mxu0 0.0
        %849 = vmatprep.subr.mxu0 0.0
        %850 = vmatpush1.msra.mxu0 0.0
        %851 = vmatprep.subr.mxu0 0.0
        %852 = vmatpush1.msra.mxu0 0.0
        %853 = vmatprep.subr.mxu0 0.0
        %854 = vmatpush1.msra.mxu0 0.0
        %855 = vmatprep.subr.mxu0 0.0
        %856 = vmatpush1.msra.mxu0 0.0
        %857 = vmatprep.mubr.f32.mxu0 0.0
        %858 = vmatmul.mubr.f32.gmra.mrb[0].mxu0 %v791
        %v859 = vpop.f32.mrb[0].mxu0
        %v860 = vadd.f32 0.0, %v859
        %v861 = vpop.f32.mrb[0].mxu0
        %v862 = vadd.f32 0.0, %v861
        %863 = vdwg.mxu0
        %v864 = vld [vmem:[%s5] sm:$0xff]
        %866 = vset.pattern.permute.xlu0 0
        %867 = vperm.xlu0 %866, %v864
        %v868 = vpop.permute.xlu0 %867
        %v870 = vmul.f32 %v860, %v868
        %v871 = vmul.f32 %v862, %v868
        %v872 = vld [vmem:[%s6] sm:$0xff]
        %874 = vset.pattern.permute.xlu0 0
        %875 = vperm.xlu0 %874, %v872
        %v876 = vpop.permute.xlu0 %875
        %v878 = vadd.f32 %v870, %v876
        %v879 = vadd.f32 %v871, %v876
        %v880 = vadd.f32 %v878, %v321
        %v881 = vadd.f32 %v879, %v322
        %v882 = vmax.f32 %v880, 0.0
        %v883 = vmax.f32 %v881, 0.0
        %884 = vst [vmem:[%s284] sm:$0xff] %v882
        %885 = vst [vmem:[%s284 + $0x8] sm:$0xff] %v883
        %s886 = sand.u32 %s182, 1
        %s887 = scalar_lea.sflag [#allocation6], %s886
        %s888 = sand.u32 %s182, 1
        %s889 = smul.addr %s888, 16
        %s890 = scalar_lea.vmem [#allocation7], %s889
        // Predicated region
        $region53: #{tpu_custom_call.1} parent=47 // pred_check
          %p891 = pneg %p192
        $region54: #{tpu_custom_call.1} parent=47 // pred_check_branch
          %893 = sbr.rel (%p891) target = $region56
        $region55: #{tpu_custom_call.1} parent=47 // pred_region
          %s895 = ssub.s32 256, 256
          %896 = vsyncadd %s887, %s895
          %s897 = smul.addr %s22, 2
          %s898 = smul.addr %s897, 128
          %s899 = scalar_lea.hbm %s7, %s898
          %s901 = sshll.u32 %s890, 4
          %s902 = int_to_ptr.vmem [resolvable:$true] %s901
          %904 = dma.vmem_to_hbm [thread:$0]  %s902, 256, %s899, %s887
        $region56: #{tpu_custom_call.1} parent=47 // pred_fallthru
          _
      $region48: #{tpu_custom_call.1} parent=5 // pred_fallthru
        _
      %p905 = scmp.le.s32.totalorder 2, %s17
      // Predicated region
      $region57: #{tpu_custom_call.1} parent=5 // pred_check
        %p906 = pneg %p905
      $region58: #{tpu_custom_call.1} parent=5 // pred_check_branch
        %908 = sbr.rel (%p906) target = $region60
      $region59: #{tpu_custom_call.1} parent=5 // pred_region
        %s909 = ssub.s32 %s17, 2
        // Predicated region
        $region61: #{tpu_custom_call.1} parent=59 // pred_check
          %p910 = pneg %p198
        $region62: #{tpu_custom_call.1} parent=59 // pred_check_branch
          %912 = sbr.rel (%p910) target = $region64
        $region63: #{tpu_custom_call.1} parent=59 // pred_region
          %s913 = sand.u32 %s183, 1
          %s914 = scalar_lea.sflag [#allocation6], %s913
          %s915 = sand.u32 %s183, 1
          %s916 = smul.addr %s915, 16
          %s917 = scalar_lea.vmem [#allocation7], %s916
          %918 = dma.done %s914, 256
        $region64: #{tpu_custom_call.1} parent=59 // pred_fallthru
          _
      $region60: #{tpu_custom_call.1} parent=5 // pred_fallthru
        _
    $region6: #{tpu_custom_call.1} parent=1 // loop_footer
      %s21 = sadd.s32 1, %s17
    $region7: #{tpu_custom_call.1} parent=1 // loop_footer_branch
      %16 = sbr.rel target = $region3
    $region8: #{tpu_custom_call.1} parent=1 // loop_exit
      _
    %919 = vsyncpa [#allocation5], 1
    %s920 = scalar_lea.sflag [#allocation5], 1
    %921 = vsyncpa %s920, 1
    %922 = vsyncpa [#allocation6], 1
    %s923 = scalar_lea.sflag [#allocation6], 1
    %924 = vsyncpa %s923, 1

</llo_original>
